<compile_context>
chip_gen: v7x
topology: tpu7x:2x2x1
jax: 0.10.0
libtpu: 0.0.40
codegen_flags: <defaults>
</compile_context>

<pallas_src>
import functools

import jax
import jax.numpy as jnp
from jax.experimental import pallas as pl
from jax.experimental.pallas import tpu as pltpu


# ----------------------------------------------------------------------------- kernel
def _strategy_kernel(*refs, d: int):
    """refs = (x_t, W0, b0, [W1, b1, ..., W_{d-1}, b_{d-1}], Wout, bout, out_t).

    Layout (batch in lanes, per grid step):
      x_t, out_t : (1, B_tile)
      W0, b0     : (m, 1)
      W_i, b_i   : (m, m), (m, 1)   for 1 <= i < d
      Wout, bout : (m, 1), (1, 1)
    Activations h are (m, B_tile) f32 throughout.
    """
    x_ref = refs[0]
    out_ref = refs[-1]
    p = refs[1:-1]

    x_row = x_ref[...].astype(jnp.float32)               # (1, Bt)

    # Layer 0: 1 -> m. K=1 contraction == broadcast outer product on the VPU.
    w0 = p[0][...]                                        # (m, 1)
    b0 = p[1][...]                                        # (m, 1)
    h = jnp.maximum(w0 * x_row + b0, 0.0)                 # (m, Bt) f32

    # Layers 1..d-1: m -> m on the MXU. bf16 operands (single MXU pass), f32
    # accumulate; bias + ReLU stay f32 on the VPU.
    for i in range(1, d):
        w = p[2 * i][...].astype(jnp.bfloat16)            # (m, m)
        b = p[2 * i + 1][...]                             # (m, 1) f32
        h = jnp.maximum(
            jnp.dot(w, h.astype(jnp.bfloat16),
                    preferred_element_type=jnp.float32) + b, 0.0)

    # Output layer m -> 1 (linear): elementwise mul + sublane (XLU) reduce keeps
    # the stored slab lane-dense (1, Bt).
    wout = p[2 * d][...]                                  # (m, 1)
    bout = p[2 * d + 1][...]                              # (1, 1)
    o = jnp.sum(h * wout, axis=0, keepdims=True) + bout   # (1, Bt)
    out_ref[...] = o.astype(out_ref.dtype)


# ----------------------------------------------------------------------------- tiling
def _choose_batch_tiling(B: int, block_b: int):
    """Lane-aligned batch tile; keep >= 2 blocks when possible (v7x megacore)."""
    b128 = pl.cdiv(B, 128) * 128
    n_blocks = pl.cdiv(b128, block_b)
    if b128 >= 256:
        n_blocks = max(n_blocks, 2)
    bt = pl.cdiv(pl.cdiv(b128, n_blocks), 128) * 128
    n_blocks = pl.cdiv(b128, bt)
    return bt, n_blocks, n_blocks * bt


# ----------------------------------------------------------------------------- wrappers
def strategy_layer_rollout(x, params, *, d: int, block_b: int = 8192):
    """Fused T-step rollout of the StrategyLayer head in ONE pallas_call.

    x:      (T, B, 1) float32 — single state feature per timestep.
    params: flat list [W0, b0, ..., W_{d-1}, b_{d-1}, Wout, bout], each with a
            leading T axis, in the kernel layout documented in `_strategy_kernel`
            (W0: (T,m,1), b_i: (T,m,1), W_i: (T,m,m), Wout: (T,m,1), bout: (T,1,1)).
    Returns (T, B, 1) float32.
    """
    assert d >= 1, "StrategyLayer requires at least one intermediate dense layer"
    T, B, _ = x.shape
    bt, n_blocks, b_pad = _choose_batch_tiling(B, block_b)

    # Lane-major layout + padding done ONCE for the whole rollout.
    x_t = jnp.swapaxes(x, 1, 2).astype(jnp.float32)        # (T, 1, B)
    if b_pad != B:
        x_t = jnp.pad(x_t, ((0, 0), (0, 0), (0, b_pad - B)))

    kernel = functools.partial(_strategy_kernel, d=d)

    def batch_spec():
        return pl.BlockSpec((None, 1, bt), lambda t, i: (t, 0, i))

    def param_spec(arr):
        # Full trailing block per timestep; fetched once per t, VMEM-resident
        # across the batch sweep.
        return pl.BlockSpec((None,) + arr.shape[1:], lambda t, i: (t, 0, 0))

    in_specs = [batch_spec()] + [param_spec(p) for p in params]

    out_t = pl.pallas_call(
        kernel,
        grid=(T, n_blocks),
        in_specs=in_specs,
        out_specs=batch_spec(),
        out_shape=jax.ShapeDtypeStruct((T, 1, b_pad), jnp.float32),
        compiler_params=pltpu.CompilerParams(
            dimension_semantics=("parallel", "parallel")),
    )(x_t, *params)

    return jnp.swapaxes(out_t[:, :, :B], 1, 2)             # (T, B, 1)


def strategy_layer_forward(x, params, *, d: int, block_b: int = 8192):
    """Single StrategyLayer head. x: (B, 1); params without leading T axis."""
    assert d >= 1, "StrategyLayer requires at least one intermediate dense layer"
    params_t = [p[None] for p in params]
    return strategy_layer_rollout(x[None], params_t, d=d, block_b=block_b)[0]


# ----------------------------------------------------------------------------- params
def _he_uniform(key, shape, fan_in):
    # Matches the module's nn.init.kaiming_uniform_(weight) (a=0): bound=sqrt(6/fan_in)
    bound = jnp.sqrt(6.0 / fan_in)
    return jax.random.uniform(key, shape, jnp.float32, -bound, bound)


def init_params(key, d: int, m: int):
    """he_uniform weights, zero biases (as in StrategyLayer._initialize_weights),
    stored in the kernel layout: W_i (m, in) [PyTorch (out,in)], b_i (m,1),
    Wout (m,1) [= PyTorch (1,m) transposed], bout (1,1)."""
    params = []
    for i in range(d):
        in_f = m if i > 0 else 1
        key, sub = jax.random.split(key)
        params += [_he_uniform(sub, (m, in_f), fan_in=in_f),
                   jnp.zeros((m, 1), jnp.float32)]
    key, sub = jax.random.split(key)
    params += [_he_uniform(sub, (m, 1), fan_in=m), jnp.zeros((1, 1), jnp.float32)]
    return params


# ----------------------------------------------------------------------------- references
def strategy_layer_reference_f32(x, params, d):
    """Full-f32 reference of the module forward (HIGHEST precision matmuls)."""
    h = x.astype(jnp.float32)                               # (B, 1)
    for i in range(d):
        W, b = params[2 * i], params[2 * i + 1]             # (m,in), (m,1)
        h = jnp.maximum(
            jnp.dot(h, W.T, precision=jax.lax.Precision.HIGHEST) + b.T, 0.0)
    return jnp.dot(h, params[2 * d],
                   precision=jax.lax.Precision.HIGHEST) + params[2 * d + 1]


def strategy_layer_reference_kernel_numerics(x, params, d):
    """Reference mirroring the kernel's numerics (f32 layer-0/output,
    bf16-operand hidden matmuls with f32 accumulation)."""
    W0, b0 = params[0], params[1]
    h = jnp.maximum(x.astype(jnp.float32) * W0[:, 0] + b0[:, 0], 0.0)   # (B, m)
    for i in range(1, d):
        W, b = params[2 * i], params[2 * i + 1]
        hh = jnp.dot(h.astype(jnp.bfloat16), W.T.astype(jnp.bfloat16),
                     preferred_element_type=jnp.float32)
        h = jnp.maximum(hh + b[:, 0], 0.0)
    Wout, bout = params[2 * d], params[2 * d + 1]
    return jnp.sum(h * Wout[:, 0], axis=1, keepdims=True) + bout[0, 0]


# ----------------------------------------------------------------------------- demo / test
if __name__ == "__main__":
    key = jax.random.PRNGKey(0)

    # ---- single head: d=2 intermediate layers, hidden width m=32, batch=256 ----
    d_layers, m_hidden, batch = 2, 32, 256
    key, xk, pk = jax.random.split(key, 3)
    x = jax.random.normal(xk, (batch, 1), jnp.float32)
    params = init_params(pk, d_layers, m_hidden)

    out = jax.block_until_ready(strategy_layer_forward(x, params, d=d_layers))
    assert out.shape == (batch, 1), out.shape
    ref_k = strategy_layer_reference_kernel_numerics(x, params, d_layers)
    ref_f = strategy_layer_reference_f32(x, params, d_layers)
    assert jnp.allclose(out, ref_k, atol=1e-3, rtol=1e-3), "kernel-numerics mismatch"
    assert jnp.allclose(out, ref_f, atol=1e-1, rtol=1e-2), "bf16 drift vs f32 semantics"

    # ---- fused T-step rollout: per-timestep weights, ONE pallas_call ----
    T_steps = 4
    key, xk = jax.random.split(key)
    x_roll = jax.random.normal(xk, (T_steps, batch, 1), jnp.float32)
    per_step = []
    for _ in range(T_steps):
        key, pk = jax.random.split(key)
        per_step.append(init_params(pk, d_layers, m_hidden))
    stacked = [jnp.stack([per_step[t][j] for t in range(T_steps)])
               for j in range(len(per_step[0]))]

    out_roll = jax.block_until_ready(
        strategy_layer_rollout(x_roll, stacked, d=d_layers))
    assert out_roll.shape == (T_steps, batch, 1), out_roll.shape
    for t in range(T_steps):
        ref_t = strategy_layer_reference_kernel_numerics(x_roll[t], per_step[t], d_layers)
        assert jnp.allclose(out_roll[t], ref_t, atol=1e-3, rtol=1e-3), f"t={t} mismatch"

    # ---- spec's literal default config: d=1, m=1 (pure VPU/XLU path, exact f32) ----
    key, xk, pk = jax.random.split(key, 3)
    x_s = jax.random.normal(xk, (64, 1), jnp.float32)
    p_s = init_params(pk, 1, 1)
    out_s = jax.block_until_ready(strategy_layer_forward(x_s, p_s, d=1))
    ref_s = strategy_layer_reference_f32(x_s, p_s, 1)
    assert out_s.shape == (64, 1)
    assert jnp.allclose(out_s, ref_s, atol=1e-5, rtol=1e-5), "d=1,m=1 mismatch"

    print("KERNEL_OK")
</pallas_src>

<mosaic_0001>
module attributes {stable_mosaic.version = 11 : i64} {
  func.func @_strategy_kernel(%arg0: i32, %arg1: i32, %arg2: memref<1x1x128xf32, #tpu.memory_space<vmem>>, %arg3: memref<1x32x1xf32, #tpu.memory_space<vmem>>, %arg4: memref<1x32x1xf32, #tpu.memory_space<vmem>>, %arg5: memref<1x32x32xf32, #tpu.memory_space<vmem>>, %arg6: memref<1x32x1xf32, #tpu.memory_space<vmem>>, %arg7: memref<1x32x1xf32, #tpu.memory_space<vmem>>, %arg8: memref<1x1x1xf32, #tpu.memory_space<vmem>>, %arg9: memref<1x1x128xf32, #tpu.memory_space<vmem>>) attributes {dimension_semantics = [#tpu.dimension_semantics<parallel>, #tpu.dimension_semantics<parallel>], iteration_bounds = array<i64: 1, 2>, scalar_prefetch = 0 : i64, scratch_operands = 0 : i64, tpu.core_type = #tpu.core_type<tc>, window_params = [{transform_indices = @transform_0, window_bounds = array<i64: 1, 1, 128>}, {transform_indices = @transform_1, window_bounds = array<i64: 1, 32, 1>}, {transform_indices = @transform_2, window_bounds = array<i64: 1, 32, 1>}, {transform_indices = @transform_3, window_bounds = array<i64: 1, 32, 32>}, {transform_indices = @transform_4, window_bounds = array<i64: 1, 32, 1>}, {transform_indices = @transform_5, window_bounds = array<i64: 1, 32, 1>}, {transform_indices = @transform_6, window_bounds = array<i64: 1, 1, 1>}, {transform_indices = @transform_7, window_bounds = array<i64: 1, 1, 128>}]} {
    %c0 = arith.constant 0 : index
    %c0_0 = arith.constant 0 : index
    %c0_1 = arith.constant 0 : index
    %0 = vector.load %arg2[%c0, %c0_0, %c0_1] : memref<1x1x128xf32, #tpu.memory_space<vmem>>, vector<1x1x128xf32>
    %1 = vector.shape_cast %0 : vector<1x1x128xf32> to vector<1x128xf32>
    %c0_2 = arith.constant 0 : index
    %c0_3 = arith.constant 0 : index
    %c0_4 = arith.constant 0 : index
    %2 = vector.load %arg3[%c0_2, %c0_3, %c0_4] : memref<1x32x1xf32, #tpu.memory_space<vmem>>, vector<1x32x1xf32>
    %3 = vector.shape_cast %2 : vector<1x32x1xf32> to vector<32x1xf32>
    %c0_5 = arith.constant 0 : index
    %c0_6 = arith.constant 0 : index
    %c0_7 = arith.constant 0 : index
    %4 = vector.load %arg4[%c0_5, %c0_6, %c0_7] : memref<1x32x1xf32, #tpu.memory_space<vmem>>, vector<1x32x1xf32>
    %5 = vector.shape_cast %4 : vector<1x32x1xf32> to vector<32x1xf32>
    %6 = vector.broadcast %3 : vector<32x1xf32> to vector<32x128xf32>
    %7 = vector.broadcast %1 : vector<1x128xf32> to vector<32x128xf32>
    %8 = arith.mulf %6, %7 : vector<32x128xf32>
    %9 = vector.broadcast %5 : vector<32x1xf32> to vector<32x128xf32>
    %10 = arith.addf %8, %9 : vector<32x128xf32>
    %cst = arith.constant 0.000000e+00 : f32
    %11 = vector.broadcast %cst : f32 to vector<32x128xf32>
    %12 = arith.maximumf %10, %11 : vector<32x128xf32>
    %c0_8 = arith.constant 0 : index
    %c0_9 = arith.constant 0 : index
    %c0_10 = arith.constant 0 : index
    %13 = vector.load %arg5[%c0_8, %c0_9, %c0_10] : memref<1x32x32xf32, #tpu.memory_space<vmem>>, vector<1x32x32xf32>
    %14 = vector.shape_cast %13 : vector<1x32x32xf32> to vector<32x32xf32>
    %15 = arith.truncf %14 : vector<32x32xf32> to vector<32x32xbf16>
    %c0_11 = arith.constant 0 : index
    %c0_12 = arith.constant 0 : index
    %c0_13 = arith.constant 0 : index
    %16 = vector.load %arg6[%c0_11, %c0_12, %c0_13] : memref<1x32x1xf32, #tpu.memory_space<vmem>>, vector<1x32x1xf32>
    %17 = vector.shape_cast %16 : vector<1x32x1xf32> to vector<32x1xf32>
    %18 = arith.truncf %12 : vector<32x128xf32> to vector<32x128xbf16>
    %cst_14 = arith.constant dense<0.000000e+00> : vector<32x128xf32>
    %19 = tpu.matmul %15, %18, %cst_14 {dimension_numbers = #tpu.dot_dimension_numbers<[1], [0], [0], [1], [0, 0, 1, 1], [], []>} : vector<32x32xbf16>, vector<32x128xbf16>, vector<32x128xf32> -> vector<32x128xf32>
    %20 = vector.broadcast %17 : vector<32x1xf32> to vector<32x128xf32>
    %21 = arith.addf %19, %20 : vector<32x128xf32>
    %cst_15 = arith.constant 0.000000e+00 : f32
    %22 = vector.broadcast %cst_15 : f32 to vector<32x128xf32>
    %23 = arith.maximumf %21, %22 : vector<32x128xf32>
    %c0_16 = arith.constant 0 : index
    %c0_17 = arith.constant 0 : index
    %c0_18 = arith.constant 0 : index
    %24 = vector.load %arg7[%c0_16, %c0_17, %c0_18] : memref<1x32x1xf32, #tpu.memory_space<vmem>>, vector<1x32x1xf32>
    %25 = vector.shape_cast %24 : vector<1x32x1xf32> to vector<32x1xf32>
    %c0_19 = arith.constant 0 : index
    %c0_20 = arith.constant 0 : index
    %c0_21 = arith.constant 0 : index
    %26 = vector.load %arg8[%c0_19, %c0_20, %c0_21] : memref<1x1x1xf32, #tpu.memory_space<vmem>>, vector<1x1x1xf32>
    %27 = vector.shape_cast %26 : vector<1x1x1xf32> to vector<1x1xf32>
    %28 = vector.broadcast %25 : vector<32x1xf32> to vector<32x128xf32>
    %29 = arith.mulf %23, %28 : vector<32x128xf32>
    %cst_22 = arith.constant dense<0.000000e+00> : vector<128xf32>
    %30 = vector.multi_reduction <add>, %29, %cst_22 [0] : vector<32x128xf32> to vector<128xf32>
    %31 = vector.shape_cast %30 : vector<128xf32> to vector<1x128xf32>
    %32 = vector.broadcast %27 : vector<1x1xf32> to vector<1x128xf32>
    %33 = arith.addf %31, %32 : vector<1x128xf32>
    %c0_23 = arith.constant 0 : index
    %c0_24 = arith.constant 0 : index
    %c0_25 = arith.constant 0 : index
    %34 = vector.load %arg9[%c0_23, %c0_24, %c0_25] : memref<1x1x128xf32, #tpu.memory_space<vmem>>, vector<1x1x128xf32>
    %35 = vector.shape_cast %34 : vector<1x1x128xf32> to vector<1x128xf32>
    %36 = vector.shape_cast %33 : vector<1x128xf32> to vector<1x1x128xf32>
    tpu.vector_store %arg9[%c0_23, %c0_24, %c0_25], %36 {strides = array<i32>} : memref<1x1x128xf32, #tpu.memory_space<vmem>>, vector<1x1x128xf32>,
    return
  }
  func.func @transform_0(%arg0: i32, %arg1: i32) -> (i32, i32, i32) {
    %c0_i32 = arith.constant 0 : i32
    %c0_i32_0 = arith.constant 0 : i32
    return %arg0, %c0_i32, %arg1 : i32, i32, i32
  }
  func.func @transform_1(%arg0: i32, %arg1: i32) -> (i32, i32, i32) {
    %c0_i32 = arith.constant 0 : i32
    %c0_i32_0 = arith.constant 0 : i32
    %c0_i32_1 = arith.constant 0 : i32
    return %arg0, %c0_i32, %c0_i32_0 : i32, i32, i32
  }
  func.func @transform_2(%arg0: i32, %arg1: i32) -> (i32, i32, i32) {
    %c0_i32 = arith.constant 0 : i32
    %c0_i32_0 = arith.constant 0 : i32
    %c0_i32_1 = arith.constant 0 : i32
    return %arg0, %c0_i32, %c0_i32_0 : i32, i32, i32
  }
  func.func @transform_3(%arg0: i32, %arg1: i32) -> (i32, i32, i32) {
    %c0_i32 = arith.constant 0 : i32
    %c0_i32_0 = arith.constant 0 : i32
    %c0_i32_1 = arith.constant 0 : i32
    return %arg0, %c0_i32, %c0_i32_0 : i32, i32, i32
  }
  func.func @transform_4(%arg0: i32, %arg1: i32) -> (i32, i32, i32) {
    %c0_i32 = arith.constant 0 : i32
    %c0_i32_0 = arith.constant 0 : i32
    %c0_i32_1 = arith.constant 0 : i32
    return %arg0, %c0_i32, %c0_i32_0 : i32, i32, i32
  }
  func.func @transform_5(%arg0: i32, %arg1: i32) -> (i32, i32, i32) {
    %c0_i32 = arith.constant 0 : i32
    %c0_i32_0 = arith.constant 0 : i32
    %c0_i32_1 = arith.constant 0 : i32
    return %arg0, %c0_i32, %c0_i32_0 : i32, i32, i32
  }
  func.func @transform_6(%arg0: i32, %arg1: i32) -> (i32, i32, i32) {
    %c0_i32 = arith.constant 0 : i32
    %c0_i32_0 = arith.constant 0 : i32
    %c0_i32_1 = arith.constant 0 : i32
    return %arg0, %c0_i32, %c0_i32_0 : i32, i32, i32
  }
  func.func @transform_7(%arg0: i32, %arg1: i32) -> (i32, i32, i32) {
    %c0_i32 = arith.constant 0 : i32
    %c0_i32_0 = arith.constant 0 : i32
    return %arg0, %c0_i32, %arg1 : i32, i32, i32
  }
}

</mosaic_0001>

<llo_original>
// kernel: tpu_custom_call.1
$region0: #{tpu_custom_call.1}
  #allocation0 [shape = 'u32[]', space=smem, size = 0x4, offset = 0x4, fixed_abs, tag = 'smem constant byte address 0x4 - core index']
  #allocation1 [shape = 'u32[144,128]{1,0:T(1,128)}', space=vmem, size = 0x12000, scoped, tag = 'internal scratch']
  #allocation2 [shape = 'f32[1,1,1]{2,1,0:T(1,128)S(1)}', space=vmem, size = 0x200, scoped, tag = 'scoped memory for tpu_custom_call.1']
  %s0 = inlined_call_operand.vmem [shape: f32[1,1,256], index: 0, kind: input, shape index: {}]
  %s1 = inlined_call_operand.vmem [shape: f32[1,32,1], index: 1, kind: input, shape index: {}]
  %s2 = inlined_call_operand.vmem [shape: f32[1,32,1], index: 2, kind: input, shape index: {}]
  %s3 = inlined_call_operand.vmem [shape: f32[1,32,32], index: 3, kind: input, shape index: {}]
  %s4 = inlined_call_operand.vmem [shape: f32[1,32,1], index: 4, kind: input, shape index: {}]
  %s5 = inlined_call_operand.vmem [shape: f32[1,32,1], index: 5, kind: input, shape index: {}]
  %s6 = inlined_call_operand.<no memory space> [shape: f32[1,1,1], index: 6, kind: input, shape index: {}]
  %s7 = inlined_call_operand.hbm [shape: f32[1,1,256], index: 7, kind: output, shape index: {}]
  %s8 = sld [smem:[#allocation0]]
  $region61: #{tpu_custom_call.1} parent=0
    _
  %s10 = ssub.s32 1, %s8
  %s11 = scalar_select 0, %s10, %s8
  %v12 = vstv %s6
  %13 = vst [vmem:[#allocation2] sm:$0x1] %v12
  $region1: #{tpu_custom_call.1} parent=0
    #allocation3 [shape = 'u8[1024]{0}', space=vmem, size = 0x400, scoped, tag = 'output window, operand 0']
    #allocation4 [shape = 's32[2]{0}', space=sflag, size = 0x8, scoped, tag = 'scoped memory for tpu_custom_call.1']
    %14 = vsyncpa [#allocation4], 0
    %s15 = scalar_lea.sflag [#allocation4], 1
    %16 = vsyncpa %s15, 0
    loop: start=0, step=1, limit=4
    $region2: #{tpu_custom_call.1} parent=1 // loop_pre_header
      _
    $region3: #{tpu_custom_call.1} parent=1 // loop_header
      %s18 = sphi 0, %s22
      %p19 = scmp.ge.s32.totalorder %s18, 4
      %s25 = sphi 0, %s37
      %s26 = sphi 0, %s33
      %s27 = sphi 0, %s25
      %s28 = sphi 0, %s26
      %s29 = sphi 0, %s27
      %s30 = sphi 0, %s28
      %s42 = sphi 0, %s44
      %s45 = sphi 0, %s42
      %s46 = sphi 0, %s45
      %s62 = sphi 0, %s46
      %s68 = sphi 0, %s70
      %s71 = sphi 0, %s68
      %s72 = sphi 0, %s71
      %s88 = sphi 0, %s72
      %s94 = sphi 0, %s96
      %s97 = sphi 0, %s94
      %s98 = sphi 0, %s97
      %s114 = sphi 0, %s98
      %s120 = sphi 0, %s122
      %s123 = sphi 0, %s120
      %s124 = sphi 0, %s123
      %s140 = sphi 0, %s124
      %s146 = sphi 0, %s148
      %s149 = sphi 0, %s146
      %s150 = sphi 0, %s149
      %s166 = sphi 0, %s150
      %s172 = sphi 0, %s174
      %s175 = sphi 0, %s172
      %s176 = sphi 0, %s175
      %s192 = sphi 0, %s176
      %s198 = sphi 0, %s200
      %s201 = sphi 0, %s198
      %s202 = sphi 0, %s201
      %s218 = sphi 0, %s202
      %s226 = sphi 0, %s228
      %s229 = sphi 0, %s226
      %s230 = sphi 0, %s229
      %s246 = sphi 0, %s230
    $region4: #{tpu_custom_call.1} parent=1 // loop_header_branch
      %21 = sbr.rel (%p19) target = $region8
    $region5: #{tpu_custom_call.1} parent=1 // loop_body
      %s23 = ssub.s32 %s18, 1
      %s24 = ssub.s32 %s18, 2
      %s31 = sadd.s32 1, %s26
      %p32 = scmp.ge.s32.totalorder %s31, 2
      %s33 = scalar_select %p32, 0, %s31
      %s34 = sadd.s32 1, %s25
      %s35 = scalar_select %p32, %s34, %s25
      %p36 = scmp.ge.s32.totalorder %s35, 1
      %s37 = scalar_select %p36, 0, %s35
      %s38 = ssub.s32 %s25, %s37
      %s39 = ssub.s32 %s26, %s33
      %s40 = sor.u32 %s38, %s39
      %p41 = scmp.eq.s32.totalorder %s40, 0
      %s43 = sadd.s32 %s42, 1
      %s44 = scalar_select %p41, %s42, %s43
      %p47 = pneg %p41
      %p48 = scmp.eq.s32.totalorder %s18, 1
      %p49 = por %p47, %p48
      %p50 = scmp.ne.s32.totalorder %s42, %s45
      %p51 = scmp.eq.s32.totalorder %s18, 0
      %p52 = por %p50, %p51
      %p53 = scmp.ne.s32.totalorder %s42, %s45
      %p54 = scmp.eq.s32.totalorder %s23, 1
      %p55 = por %p53, %p54
      %p56 = scmp.ne.s32.totalorder %s45, %s46
      %p57 = scmp.eq.s32.totalorder %s23, 0
      %p58 = por %p56, %p57
      %p59 = scmp.ne.s32.totalorder %s45, %s46
      %p60 = scmp.eq.s32.totalorder %s24, 1
      %p61 = por %p59, %p60
      %p63 = scmp.ne.s32.totalorder %s46, %s62
      %p64 = scmp.eq.s32.totalorder %s24, 0
      %p65 = por %p63, %p64
      %s66 = ssub.s32 %s25, %s37
      %p67 = scmp.eq.s32.totalorder %s66, 0
      %s69 = sadd.s32 %s68, 1
      %s70 = scalar_select %p67, %s68, %s69
      %p73 = pneg %p67
      %p74 = scmp.eq.s32.totalorder %s18, 1
      %p75 = por %p73, %p74
      %p76 = scmp.ne.s32.totalorder %s68, %s71
      %p77 = scmp.eq.s32.totalorder %s18, 0
      %p78 = por %p76, %p77
      %p79 = scmp.ne.s32.totalorder %s68, %s71
      %p80 = scmp.eq.s32.totalorder %s23, 1
      %p81 = por %p79, %p80
      %p82 = scmp.ne.s32.totalorder %s71, %s72
      %p83 = scmp.eq.s32.totalorder %s23, 0
      %p84 = por %p82, %p83
      %p85 = scmp.ne.s32.totalorder %s71, %s72
      %p86 = scmp.eq.s32.totalorder %s24, 1
      %p87 = por %p85, %p86
      %p89 = scmp.ne.s32.totalorder %s72, %s88
      %p90 = scmp.eq.s32.totalorder %s24, 0
      %p91 = por %p89, %p90
      %s92 = ssub.s32 %s25, %s37
      %p93 = scmp.eq.s32.totalorder %s92, 0
      %s95 = sadd.s32 %s94, 1
      %s96 = scalar_select %p93, %s94, %s95
      %p99 = pneg %p93
      %p100 = scmp.eq.s32.totalorder %s18, 1
      %p101 = por %p99, %p100
      %p102 = scmp.ne.s32.totalorder %s94, %s97
      %p103 = scmp.eq.s32.totalorder %s18, 0
      %p104 = por %p102, %p103
      %p105 = scmp.ne.s32.totalorder %s94, %s97
      %p106 = scmp.eq.s32.totalorder %s23, 1
      %p107 = por %p105, %p106
      %p108 = scmp.ne.s32.totalorder %s97, %s98
      %p109 = scmp.eq.s32.totalorder %s23, 0
      %p110 = por %p108, %p109
      %p111 = scmp.ne.s32.totalorder %s97, %s98
      %p112 = scmp.eq.s32.totalorder %s24, 1
      %p113 = por %p111, %p112
      %p115 = scmp.ne.s32.totalorder %s98, %s114
      %p116 = scmp.eq.s32.totalorder %s24, 0
      %p117 = por %p115, %p116
      %s118 = ssub.s32 %s25, %s37
      %p119 = scmp.eq.s32.totalorder %s118, 0
      %s121 = sadd.s32 %s120, 1
      %s122 = scalar_select %p119, %s120, %s121
      %p125 = pneg %p119
      %p126 = scmp.eq.s32.totalorder %s18, 1
      %p127 = por %p125, %p126
      %p128 = scmp.ne.s32.totalorder %s120, %s123
      %p129 = scmp.eq.s32.totalorder %s18, 0
      %p130 = por %p128, %p129
      %p131 = scmp.ne.s32.totalorder %s120, %s123
      %p132 = scmp.eq.s32.totalorder %s23, 1
      %p133 = por %p131, %p132
      %p134 = scmp.ne.s32.totalorder %s123, %s124
      %p135 = scmp.eq.s32.totalorder %s23, 0
      %p136 = por %p134, %p135
      %p137 = scmp.ne.s32.totalorder %s123, %s124
      %p138 = scmp.eq.s32.totalorder %s24, 1
      %p139 = por %p137, %p138
      %p141 = scmp.ne.s32.totalorder %s124, %s140
      %p142 = scmp.eq.s32.totalorder %s24, 0
      %p143 = por %p141, %p142
      %s144 = ssub.s32 %s25, %s37
      %p145 = scmp.eq.s32.totalorder %s144, 0
      %s147 = sadd.s32 %s146, 1
      %s148 = scalar_select %p145, %s146, %s147
      %p151 = pneg %p145
      %p152 = scmp.eq.s32.totalorder %s18, 1
      %p153 = por %p151, %p152
      %p154 = scmp.ne.s32.totalorder %s146, %s149
      %p155 = scmp.eq.s32.totalorder %s18, 0
      %p156 = por %p154, %p155
      %p157 = scmp.ne.s32.totalorder %s146, %s149
      %p158 = scmp.eq.s32.totalorder %s23, 1
      %p159 = por %p157, %p158
      %p160 = scmp.ne.s32.totalorder %s149, %s150
      %p161 = scmp.eq.s32.totalorder %s23, 0
      %p162 = por %p160, %p161
      %p163 = scmp.ne.s32.totalorder %s149, %s150
      %p164 = scmp.eq.s32.totalorder %s24, 1
      %p165 = por %p163, %p164
      %p167 = scmp.ne.s32.totalorder %s150, %s166
      %p168 = scmp.eq.s32.totalorder %s24, 0
      %p169 = por %p167, %p168
      %s170 = ssub.s32 %s25, %s37
      %p171 = scmp.eq.s32.totalorder %s170, 0
      %s173 = sadd.s32 %s172, 1
      %s174 = scalar_select %p171, %s172, %s173
      %p177 = pneg %p171
      %p178 = scmp.eq.s32.totalorder %s18, 1
      %p179 = por %p177, %p178
      %p180 = scmp.ne.s32.totalorder %s172, %s175
      %p181 = scmp.eq.s32.totalorder %s18, 0
      %p182 = por %p180, %p181
      %p183 = scmp.ne.s32.totalorder %s172, %s175
      %p184 = scmp.eq.s32.totalorder %s23, 1
      %p185 = por %p183, %p184
      %p186 = scmp.ne.s32.totalorder %s175, %s176
      %p187 = scmp.eq.s32.totalorder %s23, 0
      %p188 = por %p186, %p187
      %p189 = scmp.ne.s32.totalorder %s175, %s176
      %p190 = scmp.eq.s32.totalorder %s24, 1
      %p191 = por %p189, %p190
      %p193 = scmp.ne.s32.totalorder %s176, %s192
      %p194 = scmp.eq.s32.totalorder %s24, 0
      %p195 = por %p193, %p194
      %s196 = ssub.s32 %s25, %s37
      %p197 = scmp.eq.s32.totalorder %s196, 0
      %s199 = sadd.s32 %s198, 1
      %s200 = scalar_select %p197, %s198, %s199
      %p203 = pneg %p197
      %p204 = scmp.eq.s32.totalorder %s18, 1
      %p205 = por %p203, %p204
      %p206 = scmp.ne.s32.totalorder %s198, %s201
      %p207 = scmp.eq.s32.totalorder %s18, 0
      %p208 = por %p206, %p207
      %p209 = scmp.ne.s32.totalorder %s198, %s201
      %p210 = scmp.eq.s32.totalorder %s23, 1
      %p211 = por %p209, %p210
      %p212 = scmp.ne.s32.totalorder %s201, %s202
      %p213 = scmp.eq.s32.totalorder %s23, 0
      %p214 = por %p212, %p213
      %p215 = scmp.ne.s32.totalorder %s201, %s202
      %p216 = scmp.eq.s32.totalorder %s24, 1
      %p217 = por %p215, %p216
      %p219 = scmp.ne.s32.totalorder %s202, %s218
      %p220 = scmp.eq.s32.totalorder %s24, 0
      %p221 = por %p219, %p220
      %s222 = ssub.s32 %s25, %s37
      %s223 = ssub.s32 %s26, %s33
      %s224 = sor.u32 %s222, %s223
      %p225 = scmp.eq.s32.totalorder %s224, 0
      %s227 = sadd.s32 %s226, 1
      %s228 = scalar_select %p225, %s226, %s227
      %p231 = pneg %p225
      %p232 = scmp.eq.s32.totalorder %s18, 1
      %p233 = por %p231, %p232
      %p234 = scmp.ne.s32.totalorder %s226, %s229
      %p235 = scmp.eq.s32.totalorder %s18, 0
      %p236 = por %p234, %p235
      %p237 = scmp.ne.s32.totalorder %s226, %s229
      %p238 = scmp.eq.s32.totalorder %s23, 1
      %p239 = por %p237, %p238
      %p240 = scmp.ne.s32.totalorder %s229, %s230
      %p241 = scmp.eq.s32.totalorder %s23, 0
      %p242 = por %p240, %p241
      %p243 = scmp.ne.s32.totalorder %s229, %s230
      %p244 = scmp.eq.s32.totalorder %s24, 1
      %p245 = por %p243, %p244
      %p247 = scmp.ne.s32.totalorder %s230, %s246
      %p248 = scmp.eq.s32.totalorder %s24, 0
      %p249 = por %p247, %p248
      %p250 = scmp.le.s32.totalorder 1, %s18
      %p251 = scmp.lt.s32.totalorder %s18, 3
      %p252 = pnand %p250, %p251
      %p253 = pneg %p252
      // Predicated region
      $region9: #{tpu_custom_call.1} parent=5 // pred_check
        _
      $region10: #{tpu_custom_call.1} parent=5 // pred_check_branch
        %255 = sbr.rel (%p252) target = $region12
      $region11: #{tpu_custom_call.1} parent=5 // pred_region
        %s256 = ssub.s32 %s18, 1
        // Predicated region
        $region13: #{tpu_custom_call.1} parent=11 // pred_check
          %p257 = pneg %p84
        $region14: #{tpu_custom_call.1} parent=11 // pred_check_branch
          %259 = sbr.rel (%p257) target = $region16
        $region15: #{tpu_custom_call.1} parent=11 // pred_region
          %p260 = scmp.lt.s32.totalorder %s27, 0
          %s261 = scalar_select %p260, %s27, 0
          %s262 = smul.addr %s261, 4
          %s263 = smul.addr %s262, 8
          %s264 = scalar_lea.vmem %s1, %s263
        $region16: #{tpu_custom_call.1} parent=11 // pred_fallthru
          _
        // Predicated region
        $region17: #{tpu_custom_call.1} parent=11 // pred_check
          %p265 = pneg %p110
        $region18: #{tpu_custom_call.1} parent=11 // pred_check_branch
          %267 = sbr.rel (%p265) target = $region20
        $region19: #{tpu_custom_call.1} parent=11 // pred_region
          %p268 = scmp.lt.s32.totalorder %s27, 0
          %s269 = scalar_select %p268, %s27, 0
          %s270 = smul.addr %s269, 4
          %s271 = smul.addr %s270, 8
          %s272 = scalar_lea.vmem %s2, %s271
        $region20: #{tpu_custom_call.1} parent=11 // pred_fallthru
          _
        // Predicated region
        $region21: #{tpu_custom_call.1} parent=11 // pred_check
          %p273 = pneg %p136
        $region22: #{tpu_custom_call.1} parent=11 // pred_check_branch
          %275 = sbr.rel (%p273) target = $region24
        $region23: #{tpu_custom_call.1} parent=11 // pred_region
          %p276 = scmp.lt.s32.totalorder %s27, 0
          %s277 = scalar_select %p276, %s27, 0
          %s278 = smul.addr %s277, 4
          %s279 = smul.addr %s278, 8
          %s280 = scalar_lea.vmem %s3, %s279
        $region24: #{tpu_custom_call.1} parent=11 // pred_fallthru
          _
        // Predicated region
        $region25: #{tpu_custom_call.1} parent=11 // pred_check
          %p281 = pneg %p162
        $region26: #{tpu_custom_call.1} parent=11 // pred_check_branch
          %283 = sbr.rel (%p281) target = $region28
        $region27: #{tpu_custom_call.1} parent=11 // pred_region
          %p284 = scmp.lt.s32.totalorder %s27, 0
          %s285 = scalar_select %p284, %s27, 0
          %s286 = smul.addr %s285, 4
          %s287 = smul.addr %s286, 8
          %s288 = scalar_lea.vmem %s4, %s287
        $region28: #{tpu_custom_call.1} parent=11 // pred_fallthru
          _
        // Predicated region
        $region29: #{tpu_custom_call.1} parent=11 // pred_check
          %p289 = pneg %p188
        $region30: #{tpu_custom_call.1} parent=11 // pred_check_branch
          %291 = sbr.rel (%p289) target = $region32
        $region31: #{tpu_custom_call.1} parent=11 // pred_region
          %p292 = scmp.lt.s32.totalorder %s27, 0
          %s293 = scalar_select %p292, %s27, 0
          %s294 = smul.addr %s293, 4
          %s295 = smul.addr %s294, 8
          %s296 = scalar_lea.vmem %s5, %s295
        $region32: #{tpu_custom_call.1} parent=11 // pred_fallthru
          _
        // Predicated region
        $region33: #{tpu_custom_call.1} parent=11 // pred_check
          %p297 = pneg %p214
        $region34: #{tpu_custom_call.1} parent=11 // pred_check_branch
          %299 = sbr.rel (%p297) target = $region36
        $region35: #{tpu_custom_call.1} parent=11 // pred_region
          %p300 = scmp.lt.s32.totalorder %s27, 0
          %s301 = scalar_select %p300, %s27, 0
          %s302 = scalar_lea.vmem [#allocation2], %s301
        $region36: #{tpu_custom_call.1} parent=11 // pred_fallthru
          _
      $region12: #{tpu_custom_call.1} parent=5 // pred_fallthru
        _
      %p303 = scmp.lt.s32.totalorder %s18, 2
      // Predicated region
      $region37: #{tpu_custom_call.1} parent=5 // pred_check
        %p304 = pneg %p303
      $region38: #{tpu_custom_call.1} parent=5 // pred_check_branch
        %306 = sbr.rel (%p304) target = $region40
      $region39: #{tpu_custom_call.1} parent=5 // pred_region
        // Predicated region
        $region41: #{tpu_custom_call.1} parent=39 // pred_check
          %p307 = pneg %p52
        $region42: #{tpu_custom_call.1} parent=39 // pred_check_branch
          %309 = sbr.rel (%p307) target = $region44
        $region43: #{tpu_custom_call.1} parent=39 // pred_region
          %p310 = scmp.lt.s32.totalorder %s25, 0
          %s311 = scalar_select %p310, %s25, 0
          %p312 = scmp.lt.s32.totalorder %s26, 1
          %s313 = scalar_select %p312, %s26, 1
          %s314 = smul.addr %s311, 2
          %s315 = sadd.s32 %s313, %s314
          %s316 = scalar_lea.vmem %s0, %s315
        $region44: #{tpu_custom_call.1} parent=39 // pred_fallthru
          _
      $region40: #{tpu_custom_call.1} parent=5 // pred_fallthru
        _
      %p317 = scmp.le.s32.totalorder 1, %s18
      %p318 = scmp.lt.s32.totalorder %s18, 3
      %p319 = pnand %p317, %p318
      %p320 = pneg %p319
      // Predicated region
      $region45: #{tpu_custom_call.1} parent=5 // pred_check
        _
      $region46: #{tpu_custom_call.1} parent=5 // pred_check_branch
        %322 = sbr.rel (%p319) target = $region48
      $region47: #{tpu_custom_call.1} parent=5 // pred_region
        %s323 = ssub.s32 %s18, 1
        %p324 = scmp.lt.s32.totalorder %s27, 0
        %s325 = scalar_select %p324, %s27, 0
        %p326 = scmp.lt.s32.totalorder %s28, 1
        %s327 = scalar_select %p326, %s28, 1
        %s328 = smul.addr %s325, 2
        %s329 = sadd.s32 %s327, %s328
        %s330 = scalar_lea.vmem %s0, %s329
        %p331 = pneg %p58
        %p332 = pneg %p55
        %p333 = scmp.lt.s32.totalorder %s27, 0
        %s334 = scalar_select %p333, %s27, 0
        %s335 = smul.addr %s334, 4
        %s336 = smul.addr %s335, 8
        %s337 = scalar_lea.vmem %s1, %s336
        %p338 = pneg %p84
        %p339 = pneg %p81
        %p340 = scmp.lt.s32.totalorder %s27, 0
        %s341 = scalar_select %p340, %s27, 0
        %s342 = smul.addr %s341, 4
        %s343 = smul.addr %s342, 8
        %s344 = scalar_lea.vmem %s2, %s343
        %p345 = pneg %p110
        %p346 = pneg %p107
        %p347 = scmp.lt.s32.totalorder %s27, 0
        %s348 = scalar_select %p347, %s27, 0
        %s349 = smul.addr %s348, 4
        %s350 = smul.addr %s349, 8
        %s351 = scalar_lea.vmem %s3, %s350
        %p352 = pneg %p136
        %p353 = pneg %p133
        %p354 = scmp.lt.s32.totalorder %s27, 0
        %s355 = scalar_select %p354, %s27, 0
        %s356 = smul.addr %s355, 4
        %s357 = smul.addr %s356, 8
        %s358 = scalar_lea.vmem %s4, %s357
        %p359 = pneg %p162
        %p360 = pneg %p159
        %p361 = scmp.lt.s32.totalorder %s27, 0
        %s362 = scalar_select %p361, %s27, 0
        %s363 = smul.addr %s362, 4
        %s364 = smul.addr %s363, 8
        %s365 = scalar_lea.vmem %s5, %s364
        %p366 = pneg %p188
        %p367 = pneg %p185
        %p368 = scmp.lt.s32.totalorder %s27, 0
        %s369 = scalar_select %p368, %s27, 0
        %s370 = scalar_lea.vmem [#allocation2], %s369
        %p371 = pneg %p214
        %p372 = pneg %p211
        %p373 = pneg %p242
        %p374 = pneg %p239
        %s375 = sand.u32 %s229, 1
        %s376 = scalar_lea.sflag [#allocation4], %s375
        %s377 = sand.u32 %s229, 1
        %s378 = scalar_lea.vmem [#allocation3], %s377
        %p379 = scmp.lt.s32.totalorder %s27, 0
        %s380 = scalar_select %p379, %s27, 0
        %p381 = scmp.lt.s32.totalorder %s28, 1
        %s382 = scalar_select %p381, %s28, 1
        %s383 = smul.addr %s380, 2
        %s384 = sadd.s32 %s382, %s383
        %s385 = scalar_lea.vmem %s0, %s384
        %p386 = scmp.lt.s32.totalorder %s27, 0
        %s387 = scalar_select %p386, %s27, 0
        %s388 = smul.addr %s387, 4
        %s389 = smul.addr %s388, 8
        %s390 = scalar_lea.vmem %s1, %s389
        %p391 = scmp.lt.s32.totalorder %s27, 0
        %s392 = scalar_select %p391, %s27, 0
        %s393 = smul.addr %s392, 4
        %s394 = smul.addr %s393, 8
        %s395 = scalar_lea.vmem %s2, %s394
        %p396 = scmp.lt.s32.totalorder %s27, 0
        %s397 = scalar_select %p396, %s27, 0
        %s398 = smul.addr %s397, 4
        %s399 = smul.addr %s398, 8
        %s400 = scalar_lea.vmem %s3, %s399
        %p401 = scmp.lt.s32.totalorder %s27, 0
        %s402 = scalar_select %p401, %s27, 0
        %s403 = smul.addr %s402, 4
        %s404 = smul.addr %s403, 8
        %s405 = scalar_lea.vmem %s4, %s404
        %p406 = scmp.lt.s32.totalorder %s27, 0
        %s407 = scalar_select %p406, %s27, 0
        %s408 = smul.addr %s407, 4
        %s409 = smul.addr %s408, 8
        %s410 = scalar_lea.vmem %s5, %s409
        %p411 = scmp.lt.s32.totalorder %s27, 0
        %s412 = scalar_select %p411, %s27, 0
        %s413 = scalar_lea.vmem [#allocation2], %s412
        %v415 = vld [vmem:[%s385] sm:$0x1]
        %v416 = vld [vmem:[%s390] sm:$0xff]
        %v417 = vld [vmem:[%s390 + $0x8] sm:$0xff]
        %v418 = vld [vmem:[%s390 + $0x10] sm:$0xff]
        %v419 = vld [vmem:[%s390 + $0x18] sm:$0xff]
        %v420 = vld [vmem:[%s395] sm:$0xff]
        %v421 = vld [vmem:[%s395 + $0x8] sm:$0xff]
        %v422 = vld [vmem:[%s395 + $0x10] sm:$0xff]
        %v423 = vld [vmem:[%s395 + $0x18] sm:$0xff]
        %425 = vset.pattern.permute.xlu0 0
        %426 = vperm.xlu0 %425, %v416
        %v427 = vpop.permute.xlu0 %426
        %430 = vset.pattern.permute.xlu0 0
        %431 = vperm.xlu0 %430, %v417
        %v432 = vpop.permute.xlu0 %431
        %435 = vset.pattern.permute.xlu0 0
        %436 = vperm.xlu0 %435, %v418
        %v437 = vpop.permute.xlu0 %436
        %440 = vset.pattern.permute.xlu0 0
        %441 = vperm.xlu0 %440, %v419
        %v442 = vpop.permute.xlu0 %441
        %v445 = vlaneseq
        %v446 = vshrl.u32 %v445, 7
        %v447 = vsub.s32 0, %v446
        %v448 = vrot.slane %v415, %v447
        %v450 = vmul.f32 %v427, %v448
        %v451 = vmul.f32 %v432, %v448
        %v452 = vmul.f32 %v437, %v448
        %v453 = vmul.f32 %v442, %v448
        %455 = vset.pattern.permute.xlu0 0
        %456 = vperm.xlu0 %455, %v420
        %v457 = vpop.permute.xlu0 %456
        %460 = vset.pattern.permute.xlu0 0
        %461 = vperm.xlu0 %460, %v421
        %v462 = vpop.permute.xlu0 %461
        %465 = vset.pattern.permute.xlu0 0
        %466 = vperm.xlu0 %465, %v422
        %v467 = vpop.permute.xlu0 %466
        %470 = vset.pattern.permute.xlu0 0
        %471 = vperm.xlu0 %470, %v423
        %v472 = vpop.permute.xlu0 %471
        %v474 = vadd.f32 %v450, %v457
        %v475 = vadd.f32 %v451, %v462
        %v476 = vadd.f32 %v452, %v467
        %v477 = vadd.f32 %v453, %v472
        %v478 = vmax.f32 %v474, 0.0
        %v479 = vmax.f32 %v475, 0.0
        %v480 = vmax.f32 %v476, 0.0
        %v481 = vmax.f32 %v477, 0.0
        %v482 = vld [vmem:[%s400] sm:$0xff]
        %v483 = vld [vmem:[%s400 + $0x8] sm:$0xff]
        %v484 = vld [vmem:[%s400 + $0x10] sm:$0xff]
        %v485 = vld [vmem:[%s400 + $0x18] sm:$0xff]
        %v486 = vpack.c.bf16 %v483, %v482
        %v487 = vpack.c.bf16 %v485, %v484
        %v488 = vld [vmem:[%s405] sm:$0xff]
        %v489 = vld [vmem:[%s405 + $0x8] sm:$0xff]
        %v490 = vld [vmem:[%s405 + $0x10] sm:$0xff]
        %v491 = vld [vmem:[%s405 + $0x18] sm:$0xff]
        %v492 = vpack.c.bf16 %v479, %v478
        %v493 = vpack.c.bf16 %v481, %v480
        %495 = vset.pattern.permute.xlu0 0
        %496 = vperm.xlu0 %495, %v488
        %v497 = vpop.permute.xlu0 %496
        %500 = vset.pattern.permute.xlu0 0
        %501 = vperm.xlu0 %500, %v489
        %v502 = vpop.permute.xlu0 %501
        %505 = vset.pattern.permute.xlu0 0
        %506 = vperm.xlu0 %505, %v490
        %v507 = vpop.permute.xlu0 %506
        %510 = vset.pattern.permute.xlu0 0
        %511 = vperm.xlu0 %510, %v491
        %v512 = vpop.permute.xlu0 %511
        %vm514 = vcmask 261120
        %v516 = vsel %vm514, %v486, 0
        %v519 = vsel %vm514, %v487, 0
        %521 = vmatprep.subr.bf16.mxu0 0
        %522 = vmatpush1.bf16.msra.mxu0 %v492
        %523 = vmatprep.subr.bf16.mxu0 0
        %524 = vmatpush1.bf16.msra.mxu0 %v493
        %525 = vmatprep.subr.bf16.mxu0 0
        %526 = vmatpush1.bf16.msra.mxu0 0
        %527 = vmatprep.subr.bf16.mxu0 0
        %528 = vmatpush1.bf16.msra.mxu0 0
        %529 = vmatprep.subr.bf16.mxu0 0
        %530 = vmatpush1.bf16.msra.mxu0 0
        %531 = vmatprep.subr.bf16.mxu0 0
        %532 = vmatpush1.bf16.msra.mxu0 0
        %533 = vmatprep.subr.bf16.mxu0 0
        %534 = vmatpush1.bf16.msra.mxu0 0
        %535 = vmatprep.subr.bf16.mxu0 0
        %536 = vmatpush1.bf16.msra.mxu0 0
        %537 = vmatprep.subr.bf16.mxu0 0
        %538 = vmatpush1.bf16.msra.mxu0 0
        %539 = vmatprep.subr.bf16.mxu0 0
        %540 = vmatpush1.bf16.msra.mxu0 0
        %541 = vmatprep.subr.bf16.mxu0 0
        %542 = vmatpush1.bf16.msra.mxu0 0
        %543 = vmatprep.subr.bf16.mxu0 0
        %544 = vmatpush1.bf16.msra.mxu0 0
        %545 = vmatprep.subr.bf16.mxu0 0
        %546 = vmatpush1.bf16.msra.mxu0 0
        %547 = vmatprep.subr.bf16.mxu0 0
        %548 = vmatpush1.bf16.msra.mxu0 0
        %549 = vmatprep.subr.bf16.mxu0 0
        %550 = vmatpush1.bf16.msra.mxu0 0
        %551 = vmatprep.subr.bf16.mxu0 0
        %552 = vmatpush1.bf16.msra.mxu0 0
        %553 = vmatprep.mubr.bf16.mxu0 0
        %554 = vmatmul.mubr.bf16.gmra.mrb[0].mxu0 %v516
        %v555 = vpop.f32.mrb[0].mxu0
        %v556 = vadd.f32 %v497, %v555
        %v557 = vpop.f32.mrb[0].mxu0
        %v558 = vpop.f32.mrb[0].mxu0
        %v559 = vadd.f32 %v502, %v558
        %v560 = vpop.f32.mrb[0].mxu0
        %561 = vmatprep.mubr.bf16.mxu0 0
        %562 = vmatmul.mubr.bf16.gmra.mrb[0].mxu0 %v519
        %v563 = vpop.f32.mrb[0].mxu0
        %v564 = vadd.f32 %v507, %v563
        %v565 = vpop.f32.mrb[0].mxu0
        %v566 = vpop.f32.mrb[0].mxu0
        %v567 = vadd.f32 %v512, %v566
        %v568 = vpop.f32.mrb[0].mxu0
        %569 = vdwg.mxu0
        %v570 = vmax.f32 %v556, 0.0
        %v571 = vmax.f32 %v559, 0.0
        %v572 = vmax.f32 %v564, 0.0
        %v573 = vmax.f32 %v567, 0.0
        %v574 = vld [vmem:[%s410] sm:$0xff]
        %v575 = vld [vmem:[%s410 + $0x8] sm:$0xff]
        %v576 = vld [vmem:[%s410 + $0x10] sm:$0xff]
        %v577 = vld [vmem:[%s410 + $0x18] sm:$0xff]
        %v578 = vld [vmem:[%s413] sm:$0x1]
        %580 = vset.pattern.permute.xlu0 0
        %581 = vperm.xlu0 %580, %v574
        %v582 = vpop.permute.xlu0 %581
        %585 = vset.pattern.permute.xlu0 0
        %586 = vperm.xlu0 %585, %v575
        %v587 = vpop.permute.xlu0 %586
        %590 = vset.pattern.permute.xlu0 0
        %591 = vperm.xlu0 %590, %v576
        %v592 = vpop.permute.xlu0 %591
        %595 = vset.pattern.permute.xlu0 0
        %596 = vperm.xlu0 %595, %v577
        %v597 = vpop.permute.xlu0 %596
        %v599 = vmul.f32 %v570, %v582
        %v600 = vmul.f32 %v571, %v587
        %v601 = vmul.f32 %v572, %v592
        %v602 = vmul.f32 %v573, %v597
        %v603 = vadd.f32 %v599, %v600
        %v604 = vadd.f32 %v603, %v601
        %v605 = vadd.f32 %v604, %v602
        %v606 = vrot.slane %v605, 4
        %v607 = vadd.f32 %v605, %v606
        %v608 = vrot.slane %v607, 2
        %v609 = vadd.f32 %v607, %v608
        %v610 = vrot.slane %v609, 1
        %v611 = vadd.f32 %v609, %v610
        %613 = vset.pattern.permute.xlu0 0
        %614 = vperm.xlu0 %613, %v578
        %v615 = vpop.permute.xlu0 %614
        %v617 = vlaneseq
        %v618 = vshrl.u32 %v617, 7
        %v619 = vsub.s32 0, %v618
        %v620 = vrot.slane %v615, %v619
        %v621 = vadd.f32 %v611, %v620
        %622 = vst [vmem:[%s378] sm:$0x1] %v621
        %s623 = sand.u32 %s229, 1
        %s624 = scalar_lea.sflag [#allocation4], %s623
        %s625 = sand.u32 %s229, 1
        %s626 = scalar_lea.vmem [#allocation3], %s625
        // Predicated region
        $region49: #{tpu_custom_call.1} parent=47 // pred_check
          %p627 = pneg %p239
        $region50: #{tpu_custom_call.1} parent=47 // pred_check_branch
          %629 = sbr.rel (%p627) target = $region52
        $region51: #{tpu_custom_call.1} parent=47 // pred_region
          %s631 = ssub.s32 16, 16
          %632 = vsyncadd %s624, %s631
          %s633 = smul.addr %s27, 2
          %s634 = sadd.s32 %s28, %s633
          %s635 = smul.addr %s634, 16
          %s636 = scalar_lea.hbm %s7, %s635
          %s638 = sshll.u32 %s626, 4
          %s639 = int_to_ptr.vmem [resolvable:$true] %s638
          %641 = dma.vmem_to_hbm [thread:$0]  %s639, 16, %s636, %s624
        $region52: #{tpu_custom_call.1} parent=47 // pred_fallthru
          _
      $region48: #{tpu_custom_call.1} parent=5 // pred_fallthru
        _
      %p642 = scmp.le.s32.totalorder 2, %s18
      // Predicated region
      $region53: #{tpu_custom_call.1} parent=5 // pred_check
        %p643 = pneg %p642
      $region54: #{tpu_custom_call.1} parent=5 // pred_check_branch
        %645 = sbr.rel (%p643) target = $region56
      $region55: #{tpu_custom_call.1} parent=5 // pred_region
        %s646 = ssub.s32 %s18, 2
        // Predicated region
        $region57: #{tpu_custom_call.1} parent=55 // pred_check
          %p647 = pneg %p245
        $region58: #{tpu_custom_call.1} parent=55 // pred_check_branch
          %649 = sbr.rel (%p647) target = $region60
        $region59: #{tpu_custom_call.1} parent=55 // pred_region
          %s650 = sand.u32 %s230, 1
          %s651 = scalar_lea.sflag [#allocation4], %s650
          %s652 = sand.u32 %s230, 1
          %s653 = scalar_lea.vmem [#allocation3], %s652
          %654 = dma.done %s651, 16
        $region60: #{tpu_custom_call.1} parent=55 // pred_fallthru
          _
      $region56: #{tpu_custom_call.1} parent=5 // pred_fallthru
        _
    $region6: #{tpu_custom_call.1} parent=1 // loop_footer
      %s22 = sadd.s32 1, %s18
    $region7: #{tpu_custom_call.1} parent=1 // loop_footer_branch
      %17 = sbr.rel target = $region3
    $region8: #{tpu_custom_call.1} parent=1 // loop_exit
      _
    %655 = vsyncpa [#allocation4], 1
    %s656 = scalar_lea.sflag [#allocation4], 1
    %657 = vsyncpa %s656, 1

</llo_original>
